<compile_context>
chip_gen: v5e
topology: v5e:2x2
jax: 0.10.0
libtpu: 0.0.40
codegen_flags: <defaults>
</compile_context>

<pallas_src>
import jax
import jax.numpy as jnp
from jax import lax
from jax.experimental import pallas as pl
from jax.experimental.pallas import tpu as pltpu


# --------------------------------------------------------------------------- #
# Kernel
# --------------------------------------------------------------------------- #
def discrim_kernel(s_ref, a_ref, w1s_ref, w1a_ref, b1_ref, w2_ref, b2_ref,
                   w3_ref, b3_ref, o_ref):
    cdt = w1s_ref.dtype                              # MXU-operand / activation dtype

    s = s_ref[...].astype(cdt)                       # (tb, S)
    a = a_ref[...].astype(cdt)                       # (tb, A)

    # Layer 1 -- fused concat: cat([s, a], 1) @ W1 == s @ W1s + a @ W1a.
    pre1 = (jnp.dot(s, w1s_ref[...], preferred_element_type=jnp.float32)
            + jnp.dot(a, w1a_ref[...], preferred_element_type=jnp.float32)
            + b1_ref[...])                           # (tb, H) f32 accumulation
    h1 = jnp.tanh(pre1.astype(cdt))                  # bf16 tanh -> packed EUP on v6e/v7x

    # Layer 2
    pre2 = (jnp.dot(h1, w2_ref[...], preferred_element_type=jnp.float32)
            + b2_ref[...])                           # (tb, H) f32
    h2 = jnp.tanh(pre2.astype(cdt))                  # (tb, H) cdt

    # Layer 3 -- (1, H) contracted against (tb, H) -> (1, tb): logits land
    # lane-dense so the output store is full-width, not a width-1 masked vst.
    logit = lax.dot_general(
        w3_ref[...], h2,
        dimension_numbers=(((1,), (1,)), ((), ())),
        preferred_element_type=jnp.float32,
    ) + b3_ref[...]                                  # (1, tb) f32

    o_ref[...] = jax.nn.sigmoid(logit).astype(o_ref.dtype)


# --------------------------------------------------------------------------- #
# Wrapper
# --------------------------------------------------------------------------- #
def _round_up(x, m):
    return ((x + m - 1) // m) * m


def _pick_tb(batch, max_tb=4096):
    # VMEM footprint is tiny even at tb=4096 (inputs ~0.2-0.4 MB, intermediates
    # a few MB), so choose the tile for DMA size / step count, not VMEM.
    # Aim for >= 2 grid steps when the batch allows it (v7x megacore).
    half = _round_up(pl.cdiv(batch, 2), 128)
    return max(128, min(max_tb, half))


def prepare_params(params, state_dim, compute_dtype=jnp.bfloat16):
    """One-time parameter preprocessing (hoisted out of the hot path).

    Splits W1 so the (B, S+A) concat never materializes, casts matmul operands
    to `compute_dtype`, and keeps biases in f32 (added to f32 accumulators).
    """
    w1, b1, w2, b2, w3, b3 = params
    H = w1.shape[1]
    w1s = w1[:state_dim].astype(compute_dtype)        # (S, H)
    w1a = w1[state_dim:].astype(compute_dtype)        # (A, H)
    w2c = w2.astype(compute_dtype)                    # (H, H)
    w3r = w3.reshape(1, H).astype(compute_dtype)      # (H, 1) -> (1, H)
    b1f = b1.reshape(1, H).astype(jnp.float32)
    b2f = b2.reshape(1, H).astype(jnp.float32)
    b3f = b3.reshape(1, 1).astype(jnp.float32)
    return (w1s, w1a, b1f, w2c, b2f, w3r, b3f)


def discriminator_forward(state, action, prepared_params, *, tb=None,
                          pad_batch=False):
    """prob = sigmoid(MLP(cat([state, action], 1))) via one Pallas kernel."""
    w1s, w1a, b1f, w2c, b2f, w3r, b3f = prepared_params
    B = state.shape[0]
    S, H = w1s.shape
    A = w1a.shape[0]
    assert state.shape[1] == S and action.shape == (B, A)

    if tb is None:
        tb = _pick_tb(B)

    st, ac = state, action
    if pad_batch and B % tb != 0:
        # Optional padded path (kept behind a flag per review): only needed if
        # cross-row reductions are ever added to the kernel.
        Bp = _round_up(B, tb)
        st = jnp.pad(st, ((0, Bp - B), (0, 0)))
        ac = jnp.pad(ac, ((0, Bp - B), (0, 0)))
    else:
        Bp = B                                        # Pallas masks the partial block

    grid = (pl.cdiv(Bp, tb),)

    out = pl.pallas_call(
        discrim_kernel,
        out_shape=jax.ShapeDtypeStruct((1, Bp), jnp.float32),
        grid_spec=pltpu.PrefetchScalarGridSpec(
            num_scalar_prefetch=0,
            grid=grid,
            in_specs=[
                pl.BlockSpec((tb, S), lambda i: (i, 0)),   # state  (batch tiled)
                pl.BlockSpec((tb, A), lambda i: (i, 0)),   # action (batch tiled)
                pl.BlockSpec((S, H), lambda i: (0, 0)),    # W1_state  (resident)
                pl.BlockSpec((A, H), lambda i: (0, 0)),    # W1_action (resident)
                pl.BlockSpec((1, H), lambda i: (0, 0)),    # b1
                pl.BlockSpec((H, H), lambda i: (0, 0)),    # W2
                pl.BlockSpec((1, H), lambda i: (0, 0)),    # b2
                pl.BlockSpec((1, H), lambda i: (0, 0)),    # w3 row
                pl.BlockSpec((1, 1), lambda i: (0, 0)),    # b3
            ],
            out_specs=pl.BlockSpec((1, tb), lambda i: (0, i)),   # lane-dense
        ),
        compiler_params=pltpu.CompilerParams(
            dimension_semantics=("parallel",),
        ),
    )(st, ac, w1s, w1a, b1f, w2c, b2f, w3r, b3f)

    return out[0, :B][:, None]                        # (B, 1)


# --------------------------------------------------------------------------- #
# Init + pure-JAX reference
# --------------------------------------------------------------------------- #
def init_params(key, state_dim, action_dim, hidden=64):
    """Deterministic init mimicking nn.Linear (uniform +/- 1/sqrt(fan_in))."""
    d_in = state_dim + action_dim
    ks = jax.random.split(key, 6)

    def lin(kw, kb, fan_in, fan_out):
        bound = 1.0 / jnp.sqrt(fan_in)
        w = jax.random.uniform(kw, (fan_in, fan_out), jnp.float32, -bound, bound)
        b = jax.random.uniform(kb, (1, fan_out), jnp.float32, -bound, bound)
        return w, b

    w1, b1 = lin(ks[0], ks[1], d_in, hidden)
    w2, b2 = lin(ks[2], ks[3], hidden, hidden)
    w3, b3 = lin(ks[4], ks[5], hidden, 1)
    return (w1, b1, w2, b2, w3, b3)


def reference_forward(state, action, params):
    w1, b1, w2, b2, w3, b3 = params
    x = jnp.concatenate([state, action], axis=1)
    h1 = jnp.tanh(x @ w1 + b1)
    h2 = jnp.tanh(h1 @ w2 + b2)
    return jax.nn.sigmoid(h2 @ w3 + b3)


# --------------------------------------------------------------------------- #
# Smoke tests
# --------------------------------------------------------------------------- #
if __name__ == "__main__":
    key = jax.random.PRNGKey(0)
    k_s, k_a, k_p, k_s2, k_a2 = jax.random.split(key, 5)

    batch, state_dim, action_dim = 8, 8, 4
    state = jax.random.normal(k_s, (batch, state_dim), dtype=jnp.float32)
    action = jax.random.normal(k_a, (batch, action_dim), dtype=jnp.float32)
    params = init_params(k_p, state_dim, action_dim)
    ref = reference_forward(state, action, params)

    # 1) Full-precision path: tight correctness check (batch << tile -> single
    #    partial block, exercises the no-pad masking path).
    prep_f32 = prepare_params(params, state_dim, compute_dtype=jnp.float32)
    prob = jax.block_until_ready(discriminator_forward(state, action, prep_f32))
    assert prob.shape == (batch, 1)
    assert jnp.allclose(prob, ref, atol=1e-4, rtol=1e-4)

    # 2) Default bf16-operand path on a non-tile-aligned batch: multi-step grid
    #    (grid=2 at tb=128) with a masked partial last block, looser tolerance
    #    (bf16 rounds operands/activations; accumulation stays f32).
    batch2 = 200
    state2 = jax.random.normal(k_s2, (batch2, state_dim), dtype=jnp.float32)
    action2 = jax.random.normal(k_a2, (batch2, action_dim), dtype=jnp.float32)
    prep_bf16 = prepare_params(params, state_dim, compute_dtype=jnp.bfloat16)
    prob2 = jax.block_until_ready(
        discriminator_forward(state2, action2, prep_bf16))
    ref2 = reference_forward(state2, action2, params)
    assert prob2.shape == (batch2, 1)
    assert bool(jnp.all(jnp.isfinite(prob2)))
    assert jnp.allclose(prob2, ref2, atol=5e-2)

    print("KERNEL_OK")
</pallas_src>

<mosaic_0001>
module attributes {stable_mosaic.version = 11 : i64} {
  func.func @discrim_kernel(%arg0: i32, %arg1: memref<128x8xf32, #tpu.memory_space<vmem>>, %arg2: memref<128x4xf32, #tpu.memory_space<vmem>>, %arg3: memref<8x64xf32, #tpu.memory_space<vmem>>, %arg4: memref<4x64xf32, #tpu.memory_space<vmem>>, %arg5: memref<1x64xf32, #tpu.memory_space<vmem>>, %arg6: memref<64x64xf32, #tpu.memory_space<vmem>>, %arg7: memref<1x64xf32, #tpu.memory_space<vmem>>, %arg8: memref<1x64xf32, #tpu.memory_space<vmem>>, %arg9: memref<1x1xf32, #tpu.memory_space<vmem>>, %arg10: memref<1x128xf32, #tpu.memory_space<vmem>>) attributes {dimension_semantics = [#tpu.dimension_semantics<parallel>], iteration_bounds = array<i64: 1>, scalar_prefetch = 0 : i64, scratch_operands = 0 : i64, tpu.core_type = #tpu.core_type<tc>, window_params = [{transform_indices = @transform_0, window_bounds = array<i64: 128, 8>}, {transform_indices = @transform_1, window_bounds = array<i64: 128, 4>}, {pipeline_mode = #tpu.pipeline_mode<synchronous>, transform_indices = @transform_2, window_bounds = array<i64: 8, 64>}, {pipeline_mode = #tpu.pipeline_mode<synchronous>, transform_indices = @transform_3, window_bounds = array<i64: 4, 64>}, {pipeline_mode = #tpu.pipeline_mode<synchronous>, transform_indices = @transform_4, window_bounds = array<i64: 1, 64>}, {pipeline_mode = #tpu.pipeline_mode<synchronous>, transform_indices = @transform_5, window_bounds = array<i64: 64, 64>}, {pipeline_mode = #tpu.pipeline_mode<synchronous>, transform_indices = @transform_6, window_bounds = array<i64: 1, 64>}, {pipeline_mode = #tpu.pipeline_mode<synchronous>, transform_indices = @transform_7, window_bounds = array<i64: 1, 64>}, {pipeline_mode = #tpu.pipeline_mode<synchronous>, transform_indices = @transform_8, window_bounds = array<i64: 1, 1>}, {transform_indices = @transform_9, window_bounds = array<i64: 1, 128>}]} {
    %c0 = arith.constant 0 : index
    %c0_0 = arith.constant 0 : index
    %0 = vector.load %arg1[%c0, %c0_0] : memref<128x8xf32, #tpu.memory_space<vmem>>, vector<128x8xf32>
    %c0_1 = arith.constant 0 : index
    %c0_2 = arith.constant 0 : index
    %1 = vector.load %arg2[%c0_1, %c0_2] : memref<128x4xf32, #tpu.memory_space<vmem>>, vector<128x4xf32>
    %c0_3 = arith.constant 0 : index
    %c0_4 = arith.constant 0 : index
    %2 = vector.load %arg3[%c0_3, %c0_4] : memref<8x64xf32, #tpu.memory_space<vmem>>, vector<8x64xf32>
    %cst = arith.constant dense<0.000000e+00> : vector<128x64xf32>
    %3 = tpu.matmul %0, %2, %cst {dimension_numbers = #tpu.dot_dimension_numbers<[1], [0], [0], [1], [0, 0, 1, 1], [], []>} : vector<128x8xf32>, vector<8x64xf32>, vector<128x64xf32> -> vector<128x64xf32>
    %c0_5 = arith.constant 0 : index
    %c0_6 = arith.constant 0 : index
    %4 = vector.load %arg4[%c0_5, %c0_6] : memref<4x64xf32, #tpu.memory_space<vmem>>, vector<4x64xf32>
    %cst_7 = arith.constant dense<0.000000e+00> : vector<128x64xf32>
    %5 = tpu.matmul %1, %4, %cst_7 {dimension_numbers = #tpu.dot_dimension_numbers<[1], [0], [0], [1], [0, 0, 1, 1], [], []>} : vector<128x4xf32>, vector<4x64xf32>, vector<128x64xf32> -> vector<128x64xf32>
    %6 = arith.addf %3, %5 : vector<128x64xf32>
    %c0_8 = arith.constant 0 : index
    %c0_9 = arith.constant 0 : index
    %7 = vector.load %arg5[%c0_8, %c0_9] : memref<1x64xf32, #tpu.memory_space<vmem>>, vector<1x64xf32>
    %8 = vector.broadcast %7 : vector<1x64xf32> to vector<128x64xf32>
    %9 = arith.addf %6, %8 : vector<128x64xf32>
    %10 = math.tanh %9 : vector<128x64xf32>
    %c0_10 = arith.constant 0 : index
    %c0_11 = arith.constant 0 : index
    %11 = vector.load %arg6[%c0_10, %c0_11] : memref<64x64xf32, #tpu.memory_space<vmem>>, vector<64x64xf32>
    %cst_12 = arith.constant dense<0.000000e+00> : vector<128x64xf32>
    %12 = tpu.matmul %10, %11, %cst_12 {dimension_numbers = #tpu.dot_dimension_numbers<[1], [0], [0], [1], [0, 0, 1, 1], [], []>} : vector<128x64xf32>, vector<64x64xf32>, vector<128x64xf32> -> vector<128x64xf32>
    %c0_13 = arith.constant 0 : index
    %c0_14 = arith.constant 0 : index
    %13 = vector.load %arg7[%c0_13, %c0_14] : memref<1x64xf32, #tpu.memory_space<vmem>>, vector<1x64xf32>
    %14 = vector.broadcast %13 : vector<1x64xf32> to vector<128x64xf32>
    %15 = arith.addf %12, %14 : vector<128x64xf32>
    %16 = math.tanh %15 : vector<128x64xf32>
    %c0_15 = arith.constant 0 : index
    %c0_16 = arith.constant 0 : index
    %17 = vector.load %arg8[%c0_15, %c0_16] : memref<1x64xf32, #tpu.memory_space<vmem>>, vector<1x64xf32>
    %cst_17 = arith.constant dense<0.000000e+00> : vector<1x128xf32>
    %18 = tpu.matmul %17, %16, %cst_17 {dimension_numbers = #tpu.dot_dimension_numbers<[1], [1], [0], [0], [0, 0, 1, 0], [], []>} : vector<1x64xf32>, vector<128x64xf32>, vector<1x128xf32> -> vector<1x128xf32>
    %c0_18 = arith.constant 0 : index
    %c0_19 = arith.constant 0 : index
    %19 = vector.load %arg9[%c0_18, %c0_19] : memref<1x1xf32, #tpu.memory_space<vmem>>, vector<1x1xf32>
    %20 = vector.broadcast %19 : vector<1x1xf32> to vector<1x128xf32>
    %21 = arith.addf %18, %20 : vector<1x128xf32>
    %22 = arith.negf %21 : vector<1x128xf32>
    %23 = math.exp %22 : vector<1x128xf32>
    %cst_20 = arith.constant 1.000000e+00 : f32
    %24 = vector.broadcast %cst_20 : f32 to vector<1x128xf32>
    %25 = arith.addf %24, %23 : vector<1x128xf32>
    %26 = arith.divf %24, %25 : vector<1x128xf32>
    %c0_21 = arith.constant 0 : index
    %c0_22 = arith.constant 0 : index
    %27 = vector.load %arg10[%c0_21, %c0_22] : memref<1x128xf32, #tpu.memory_space<vmem>>, vector<1x128xf32>
    tpu.vector_store %arg10[%c0_21, %c0_22], %26 {strides = array<i32>} : memref<1x128xf32, #tpu.memory_space<vmem>>, vector<1x128xf32>,
    return
  }
  func.func @transform_0(%arg0: i32) -> (i32, i32) {
    %c0_i32 = arith.constant 0 : i32
    %c0_i32_0 = arith.constant 0 : i32
    return %arg0, %c0_i32 : i32, i32
  }
  func.func @transform_1(%arg0: i32) -> (i32, i32) {
    %c0_i32 = arith.constant 0 : i32
    %c0_i32_0 = arith.constant 0 : i32
    return %arg0, %c0_i32 : i32, i32
  }
  func.func @transform_2(%arg0: i32) -> (i32, i32) {
    %c0_i32 = arith.constant 0 : i32
    %c0_i32_0 = arith.constant 0 : i32
    %c0_i32_1 = arith.constant 0 : i32
    return %c0_i32, %c0_i32_0 : i32, i32
  }
  func.func @transform_3(%arg0: i32) -> (i32, i32) {
    %c0_i32 = arith.constant 0 : i32
    %c0_i32_0 = arith.constant 0 : i32
    %c0_i32_1 = arith.constant 0 : i32
    return %c0_i32, %c0_i32_0 : i32, i32
  }
  func.func @transform_4(%arg0: i32) -> (i32, i32) {
    %c0_i32 = arith.constant 0 : i32
    %c0_i32_0 = arith.constant 0 : i32
    %c0_i32_1 = arith.constant 0 : i32
    return %c0_i32, %c0_i32_0 : i32, i32
  }
  func.func @transform_5(%arg0: i32) -> (i32, i32) {
    %c0_i32 = arith.constant 0 : i32
    %c0_i32_0 = arith.constant 0 : i32
    %c0_i32_1 = arith.constant 0 : i32
    return %c0_i32, %c0_i32_0 : i32, i32
  }
  func.func @transform_6(%arg0: i32) -> (i32, i32) {
    %c0_i32 = arith.constant 0 : i32
    %c0_i32_0 = arith.constant 0 : i32
    %c0_i32_1 = arith.constant 0 : i32
    return %c0_i32, %c0_i32_0 : i32, i32
  }
  func.func @transform_7(%arg0: i32) -> (i32, i32) {
    %c0_i32 = arith.constant 0 : i32
    %c0_i32_0 = arith.constant 0 : i32
    %c0_i32_1 = arith.constant 0 : i32
    return %c0_i32, %c0_i32_0 : i32, i32
  }
  func.func @transform_8(%arg0: i32) -> (i32, i32) {
    %c0_i32 = arith.constant 0 : i32
    %c0_i32_0 = arith.constant 0 : i32
    %c0_i32_1 = arith.constant 0 : i32
    return %c0_i32, %c0_i32_0 : i32, i32
  }
  func.func @transform_9(%arg0: i32) -> (i32, i32) {
    %c0_i32 = arith.constant 0 : i32
    %c0_i32_0 = arith.constant 0 : i32
    return %c0_i32, %arg0 : i32, i32
  }
}

</mosaic_0001>

<llo_original>
// kernel: tpu_custom_call.1
$region0: #{tpu_custom_call.1}
  #allocation0 [shape = 'u32[]', space=smem, size = 0x4, offset = 0x4, fixed_abs, tag = 'smem constant byte address 0x4 - core index']
  #allocation1 [shape = 'u32[72,128]{1,0:T(1,128)}', space=vmem, size = 0x9000, scoped, tag = 'internal scratch']
  #allocation2 [shape = 'f32[1,1]{1,0:T(1,128)S(1)}', space=vmem, size = 0x200, scoped, tag = 'scoped memory for tpu_custom_call.1']
  %s0 = inlined_call_operand.vmem [shape: f32[8,8], index: 0, kind: input, shape index: {}]
  %s1 = inlined_call_operand.vmem [shape: f32[8,4], index: 1, kind: input, shape index: {}]
  %s2 = inlined_call_operand.hbm [shape: f32[8,64], index: 2, kind: input, shape index: {}]
  %s3 = inlined_call_operand.vmem [shape: f32[4,64], index: 3, kind: input, shape index: {}]
  %s4 = inlined_call_operand.vmem [shape: f32[1,64], index: 4, kind: input, shape index: {}]
  %s5 = inlined_call_operand.hbm [shape: f32[64,64], index: 5, kind: input, shape index: {}]
  %s6 = inlined_call_operand.vmem [shape: f32[1,64], index: 6, kind: input, shape index: {}]
  %s7 = inlined_call_operand.vmem [shape: f32[1,64], index: 7, kind: input, shape index: {}]
  %s8 = inlined_call_operand.<no memory space> [shape: f32[1,1], index: 8, kind: input, shape index: {}]
  %s9 = inlined_call_operand.hbm [shape: f32[1,8], index: 9, kind: output, shape index: {}]
  %s10 = sld [smem:[#allocation0]]
  $region54: #{tpu_custom_call.1} parent=0
    _
  %s12 = ssub.s32 1, %s10
  %s13 = scalar_select 0, %s12, %s10
  %v14 = vstv %s8
  %15 = vst [vmem:[#allocation2] sm:$0x1] %v14
  $region1: #{tpu_custom_call.1} parent=0
    #allocation3 [shape = 'u8[4096]{0}', space=vmem, size = 0x1000, scoped, tag = 'input window, operand 2, single buffered']
    #allocation4 [shape = 's32[1]{0}', space=sflag, size = 0x4, scoped, tag = 'scoped memory for tpu_custom_call.1']
    #allocation5 [shape = 's32[1]{0}', space=sflag, size = 0x4, scoped, tag = 'scoped memory for tpu_custom_call.1']
    #allocation6 [shape = 'u8[32768]{0}', space=vmem, size = 0x8000, scoped, tag = 'input window, operand 5, single buffered']
    #allocation7 [shape = 's32[1]{0}', space=sflag, size = 0x4, scoped, tag = 'scoped memory for tpu_custom_call.1']
    #allocation8 [shape = 'u8[512]{0}', space=vmem, size = 0x400, scoped, tag = 'output window, operand 0, single buffered']
    %16 = vsyncpa [#allocation4], 0
    %17 = vsyncpa [#allocation7], 0
    %18 = vsyncpa [#allocation5], 0
    // Predicated region
    $region2: #{tpu_custom_call.1} parent=1 // pred_check
      _
    $region3: #{tpu_custom_call.1} parent=1 // pred_check_branch
      %20 = sbr.rel (0) target = $region5
    $region4: #{tpu_custom_call.1} parent=1 // pred_region
      _
    $region5: #{tpu_custom_call.1} parent=1 // pred_fallthru
      _
    // Predicated region
    $region6: #{tpu_custom_call.1} parent=1 // pred_check
      _
    $region7: #{tpu_custom_call.1} parent=1 // pred_check_branch
      %22 = sbr.rel (0) target = $region9
    $region8: #{tpu_custom_call.1} parent=1 // pred_region
      _
    $region9: #{tpu_custom_call.1} parent=1 // pred_fallthru
      _
    // Predicated region
    $region10: #{tpu_custom_call.1} parent=1 // pred_check
      _
    $region11: #{tpu_custom_call.1} parent=1 // pred_check_branch
      %24 = sbr.rel (0) target = $region13
    $region12: #{tpu_custom_call.1} parent=1 // pred_region
      %26 = vsyncadd [#allocation4], 0
      %s28 = sshll.u32 %s2, 4
      %s29 = int_to_ptr.hbm [resolvable:$true] %s28
      %s30 = sshll.u32 [#allocation3], 4
      %s31 = int_to_ptr.vmem [resolvable:$true] %s30
      %33 = dma.hbm_to_vmem [thread:$0]  %s29, 128, %s31, [#allocation4]
    $region13: #{tpu_custom_call.1} parent=1 // pred_fallthru
      _
    // Predicated region
    $region14: #{tpu_custom_call.1} parent=1 // pred_check
      _
    $region15: #{tpu_custom_call.1} parent=1 // pred_check_branch
      %35 = sbr.rel (0) target = $region17
    $region16: #{tpu_custom_call.1} parent=1 // pred_region
      _
    $region17: #{tpu_custom_call.1} parent=1 // pred_fallthru
      _
    // Predicated region
    $region18: #{tpu_custom_call.1} parent=1 // pred_check
      _
    $region19: #{tpu_custom_call.1} parent=1 // pred_check_branch
      %37 = sbr.rel (0) target = $region21
    $region20: #{tpu_custom_call.1} parent=1 // pred_region
      _
    $region21: #{tpu_custom_call.1} parent=1 // pred_fallthru
      _
    // Predicated region
    $region22: #{tpu_custom_call.1} parent=1 // pred_check
      _
    $region23: #{tpu_custom_call.1} parent=1 // pred_check_branch
      %39 = sbr.rel (0) target = $region25
    $region24: #{tpu_custom_call.1} parent=1 // pred_region
      %41 = vsyncadd [#allocation7], 0
      %s42 = sshll.u32 %s5, 4
      %s43 = int_to_ptr.hbm [resolvable:$true] %s42
      %s44 = sshll.u32 [#allocation6], 4
      %s45 = int_to_ptr.vmem [resolvable:$true] %s44
      %50 = dma.hbm_to_vmem [thread:$0]  %s43, 1024, %s45, [#allocation7], 128, 128, 8
    $region25: #{tpu_custom_call.1} parent=1 // pred_fallthru
      _
    // Predicated region
    $region26: #{tpu_custom_call.1} parent=1 // pred_check
      _
    $region27: #{tpu_custom_call.1} parent=1 // pred_check_branch
      %52 = sbr.rel (0) target = $region29
    $region28: #{tpu_custom_call.1} parent=1 // pred_region
      _
    $region29: #{tpu_custom_call.1} parent=1 // pred_fallthru
      _
    // Predicated region
    $region30: #{tpu_custom_call.1} parent=1 // pred_check
      _
    $region31: #{tpu_custom_call.1} parent=1 // pred_check_branch
      %54 = sbr.rel (0) target = $region33
    $region32: #{tpu_custom_call.1} parent=1 // pred_region
      _
    $region33: #{tpu_custom_call.1} parent=1 // pred_fallthru
      _
    // Predicated region
    $region34: #{tpu_custom_call.1} parent=1 // pred_check
      _
    $region35: #{tpu_custom_call.1} parent=1 // pred_check_branch
      %56 = sbr.rel (0) target = $region37
    $region36: #{tpu_custom_call.1} parent=1 // pred_region
      _
    $region37: #{tpu_custom_call.1} parent=1 // pred_fallthru
      _
    // Predicated region
    $region38: #{tpu_custom_call.1} parent=1 // pred_check
      _
    $region39: #{tpu_custom_call.1} parent=1 // pred_check_branch
      %58 = sbr.rel (0) target = $region41
    $region40: #{tpu_custom_call.1} parent=1 // pred_region
      %60 = dma.done [#allocation4], 128
    $region41: #{tpu_custom_call.1} parent=1 // pred_fallthru
      _
    // Predicated region
    $region42: #{tpu_custom_call.1} parent=1 // pred_check
      _
    $region43: #{tpu_custom_call.1} parent=1 // pred_check_branch
      %62 = sbr.rel (0) target = $region45
    $region44: #{tpu_custom_call.1} parent=1 // pred_region
      %64 = dma.done [#allocation7], 1024
    $region45: #{tpu_custom_call.1} parent=1 // pred_fallthru
      _
    %v65 = vld [vmem:[%s0] sm:$0xff]
    %v66 = vld [vmem:[%s0 + $0x8] sm:$0xff]
    %v67 = vld [vmem:[%s0 + $0x10] sm:$0xff]
    %v68 = vld [vmem:[%s0 + $0x18] sm:$0xff]
    %v69 = vld [vmem:[%s0 + $0x20] sm:$0xff]
    %v70 = vld [vmem:[%s0 + $0x28] sm:$0xff]
    %v71 = vld [vmem:[%s0 + $0x30] sm:$0xff]
    %v72 = vld [vmem:[%s0 + $0x38] sm:$0xff]
    %v73 = vld [vmem:[%s0 + $0x40] sm:$0xff]
    %v74 = vld [vmem:[%s0 + $0x48] sm:$0xff]
    %v75 = vld [vmem:[%s0 + $0x50] sm:$0xff]
    %v76 = vld [vmem:[%s0 + $0x58] sm:$0xff]
    %v77 = vld [vmem:[%s0 + $0x60] sm:$0xff]
    %v78 = vld [vmem:[%s0 + $0x68] sm:$0xff]
    %v79 = vld [vmem:[%s0 + $0x70] sm:$0xff]
    %v80 = vld [vmem:[%s0 + $0x78] sm:$0xff]
    %v81 = vld [vmem:[%s1] sm:$0xff]
    %v82 = vld [vmem:[%s1 + $0x8] sm:$0xff]
    %v83 = vld [vmem:[%s1 + $0x10] sm:$0xff]
    %v84 = vld [vmem:[%s1 + $0x18] sm:$0xff]
    %v85 = vld [vmem:[%s1 + $0x20] sm:$0xff]
    %v86 = vld [vmem:[%s1 + $0x28] sm:$0xff]
    %v87 = vld [vmem:[%s1 + $0x30] sm:$0xff]
    %v88 = vld [vmem:[%s1 + $0x38] sm:$0xff]
    %v89 = vld [vmem:[%s1 + $0x40] sm:$0xff]
    %v90 = vld [vmem:[%s1 + $0x48] sm:$0xff]
    %v91 = vld [vmem:[%s1 + $0x50] sm:$0xff]
    %v92 = vld [vmem:[%s1 + $0x58] sm:$0xff]
    %v93 = vld [vmem:[%s1 + $0x60] sm:$0xff]
    %v94 = vld [vmem:[%s1 + $0x68] sm:$0xff]
    %v95 = vld [vmem:[%s1 + $0x70] sm:$0xff]
    %v96 = vld [vmem:[%s1 + $0x78] sm:$0xff]
    %v97 = vld [vmem:[#allocation3] sm:$0xff]
    %v98 = vld [vmem:[%s3] sm:$0xf]
    %vm99 = vcmask 31744
    %v101 = vsel %vm99, %v81, 0
    %v104 = vsel %vm99, %v82, 0
    %v107 = vsel %vm99, %v83, 0
    %v110 = vsel %vm99, %v84, 0
    %v113 = vsel %vm99, %v85, 0
    %v116 = vsel %vm99, %v86, 0
    %v119 = vsel %vm99, %v87, 0
    %v122 = vsel %vm99, %v88, 0
    %v125 = vsel %vm99, %v89, 0
    %v128 = vsel %vm99, %v90, 0
    %v131 = vsel %vm99, %v91, 0
    %v134 = vsel %vm99, %v92, 0
    %v137 = vsel %vm99, %v93, 0
    %v140 = vsel %vm99, %v94, 0
    %v143 = vsel %vm99, %v95, 0
    %v146 = vsel %vm99, %v96, 0
    %vm148 = vcmask 1043456
    %v150 = vsel %vm148, %v98, 0
    %152 = vmatpush.msra.mxu0 0.0
    %153 = vmatpush.msra.mxu0 0.0
    %154 = vmatpush.msra.mxu0 0.0
    %155 = vmatpush.msra.mxu0 0.0
    %156 = vmatpush.msra.mxu0 0.0
    %157 = vmatpush.msra.mxu0 0.0
    %158 = vmatpush.msra.mxu0 0.0
    %159 = vmatpush.msra.mxu0 0.0
    %160 = vmatpush.msra.mxu0 0.0
    %161 = vmatpush.msra.mxu0 0.0
    %162 = vmatpush.msra.mxu0 0.0
    %163 = vmatpush.msra.mxu0 0.0
    %164 = vmatpush.msra.mxu0 0.0
    %165 = vmatpush.msra.mxu0 0.0
    %166 = vmatpush.msra.mxu0 0.0
    %167 = vmatpush.msra.mxu0 %v150
    %168 = vmatmul.f32.gmra.mxu0 %v101
    %v169 = vpop.f32.mrf.mxu0
    %v170 = vadd.f32 0.0, %v169
    %171 = vmatmul.f32.gmra.mxu0 %v104
    %v172 = vpop.f32.mrf.mxu0
    %v173 = vadd.f32 0.0, %v172
    %174 = vmatmul.f32.gmra.mxu0 %v107
    %v175 = vpop.f32.mrf.mxu0
    %v176 = vadd.f32 0.0, %v175
    %177 = vmatmul.f32.gmra.mxu0 %v110
    %v178 = vpop.f32.mrf.mxu0
    %v179 = vadd.f32 0.0, %v178
    %180 = vmatmul.f32.gmra.mxu0 %v113
    %v181 = vpop.f32.mrf.mxu0
    %v182 = vadd.f32 0.0, %v181
    %183 = vmatmul.f32.gmra.mxu0 %v116
    %v184 = vpop.f32.mrf.mxu0
    %v185 = vadd.f32 0.0, %v184
    %186 = vmatmul.f32.gmra.mxu0 %v119
    %v187 = vpop.f32.mrf.mxu0
    %v188 = vadd.f32 0.0, %v187
    %189 = vmatmul.f32.gmra.mxu0 %v122
    %v190 = vpop.f32.mrf.mxu0
    %v191 = vadd.f32 0.0, %v190
    %192 = vmatmul.f32.gmra.mxu0 %v125
    %v193 = vpop.f32.mrf.mxu0
    %v194 = vadd.f32 0.0, %v193
    %195 = vmatmul.f32.gmra.mxu0 %v128
    %v196 = vpop.f32.mrf.mxu0
    %v197 = vadd.f32 0.0, %v196
    %198 = vmatmul.f32.gmra.mxu0 %v131
    %v199 = vpop.f32.mrf.mxu0
    %v200 = vadd.f32 0.0, %v199
    %201 = vmatmul.f32.gmra.mxu0 %v134
    %v202 = vpop.f32.mrf.mxu0
    %v203 = vadd.f32 0.0, %v202
    %204 = vmatmul.f32.gmra.mxu0 %v137
    %v205 = vpop.f32.mrf.mxu0
    %v206 = vadd.f32 0.0, %v205
    %207 = vmatmul.f32.gmra.mxu0 %v140
    %v208 = vpop.f32.mrf.mxu0
    %v209 = vadd.f32 0.0, %v208
    %210 = vmatmul.f32.gmra.mxu0 %v143
    %v211 = vpop.f32.mrf.mxu0
    %v212 = vadd.f32 0.0, %v211
    %213 = vmatmul.f32.gmra.mxu0 %v146
    %v214 = vpop.f32.mrf.mxu0
    %v215 = vadd.f32 0.0, %v214
    %216 = vdwg.mxu0
    %vm217 = vcmask 64512
    %v219 = vsel %vm217, %v65, 0
    %v222 = vsel %vm217, %v66, 0
    %v225 = vsel %vm217, %v67, 0
    %v228 = vsel %vm217, %v68, 0
    %v231 = vsel %vm217, %v69, 0
    %v234 = vsel %vm217, %v70, 0
    %v237 = vsel %vm217, %v71, 0
    %v240 = vsel %vm217, %v72, 0
    %v243 = vsel %vm217, %v73, 0
    %v246 = vsel %vm217, %v74, 0
    %v249 = vsel %vm217, %v75, 0
    %v252 = vsel %vm217, %v76, 0
    %v255 = vsel %vm217, %v77, 0
    %v258 = vsel %vm217, %v78, 0
    %v261 = vsel %vm217, %v79, 0
    %v264 = vsel %vm217, %v80, 0
    %266 = vmatpush.msra.mxu0 0.0
    %267 = vmatpush.msra.mxu0 0.0
    %268 = vmatpush.msra.mxu0 0.0
    %269 = vmatpush.msra.mxu0 0.0
    %270 = vmatpush.msra.mxu0 0.0
    %271 = vmatpush.msra.mxu0 0.0
    %272 = vmatpush.msra.mxu0 0.0
    %273 = vmatpush.msra.mxu0 0.0
    %274 = vmatpush.msra.mxu0 0.0
    %275 = vmatpush.msra.mxu0 0.0
    %276 = vmatpush.msra.mxu0 0.0
    %277 = vmatpush.msra.mxu0 0.0
    %278 = vmatpush.msra.mxu0 0.0
    %279 = vmatpush.msra.mxu0 0.0
    %280 = vmatpush.msra.mxu0 0.0
    %281 = vmatpush.msra.mxu0 %v97
    %282 = vmatmul.f32.gmra.mxu0 %v219
    %v283 = vpop.f32.mrf.mxu0
    %v284 = vadd.f32 %v170, %v283
    %285 = vmatmul.f32.gmra.mxu0 %v222
    %v286 = vpop.f32.mrf.mxu0
    %v287 = vadd.f32 %v173, %v286
    %288 = vmatmul.f32.gmra.mxu0 %v225
    %v289 = vpop.f32.mrf.mxu0
    %v290 = vadd.f32 %v176, %v289
    %291 = vmatmul.f32.gmra.mxu0 %v228
    %v292 = vpop.f32.mrf.mxu0
    %v293 = vadd.f32 %v179, %v292
    %294 = vmatmul.f32.gmra.mxu0 %v231
    %v295 = vpop.f32.mrf.mxu0
    %v296 = vadd.f32 %v182, %v295
    %297 = vmatmul.f32.gmra.mxu0 %v234
    %v298 = vpop.f32.mrf.mxu0
    %v299 = vadd.f32 %v185, %v298
    %300 = vmatmul.f32.gmra.mxu0 %v237
    %v301 = vpop.f32.mrf.mxu0
    %v302 = vadd.f32 %v188, %v301
    %303 = vmatmul.f32.gmra.mxu0 %v240
    %v304 = vpop.f32.mrf.mxu0
    %v305 = vadd.f32 %v191, %v304
    %306 = vmatmul.f32.gmra.mxu0 %v243
    %v307 = vpop.f32.mrf.mxu0
    %v308 = vadd.f32 %v194, %v307
    %309 = vmatmul.f32.gmra.mxu0 %v246
    %v310 = vpop.f32.mrf.mxu0
    %v311 = vadd.f32 %v197, %v310
    %312 = vmatmul.f32.gmra.mxu0 %v249
    %v313 = vpop.f32.mrf.mxu0
    %v314 = vadd.f32 %v200, %v313
    %315 = vmatmul.f32.gmra.mxu0 %v252
    %v316 = vpop.f32.mrf.mxu0
    %v317 = vadd.f32 %v203, %v316
    %318 = vmatmul.f32.gmra.mxu0 %v255
    %v319 = vpop.f32.mrf.mxu0
    %v320 = vadd.f32 %v206, %v319
    %321 = vmatmul.f32.gmra.mxu0 %v258
    %v322 = vpop.f32.mrf.mxu0
    %v323 = vadd.f32 %v209, %v322
    %324 = vmatmul.f32.gmra.mxu0 %v261
    %v325 = vpop.f32.mrf.mxu0
    %v326 = vadd.f32 %v212, %v325
    %327 = vmatmul.f32.gmra.mxu0 %v264
    %v328 = vpop.f32.mrf.mxu0
    %v329 = vadd.f32 %v215, %v328
    %330 = vdwg.mxu0
    %v331 = vld [vmem:[%s4] sm:$0x1]
    %v333 = vperm.slane %v331, 0
    %v335 = vadd.f32 %v284, %v333
    %v336 = vadd.f32 %v287, %v333
    %v337 = vadd.f32 %v290, %v333
    %v338 = vadd.f32 %v293, %v333
    %v339 = vadd.f32 %v296, %v333
    %v340 = vadd.f32 %v299, %v333
    %v341 = vadd.f32 %v302, %v333
    %v342 = vadd.f32 %v305, %v333
    %v343 = vadd.f32 %v308, %v333
    %v344 = vadd.f32 %v311, %v333
    %v345 = vadd.f32 %v314, %v333
    %v346 = vadd.f32 %v317, %v333
    %v347 = vadd.f32 %v320, %v333
    %v348 = vadd.f32 %v323, %v333
    %v349 = vadd.f32 %v326, %v333
    %v350 = vadd.f32 %v329, %v333
    %v351 = vtanh.pop %v335
    %v352 = vtanh.pop %v336
    %v353 = vtanh.pop %v337
    %v354 = vtanh.pop %v338
    %v355 = vtanh.pop %v339
    %v356 = vtanh.pop %v340
    %v357 = vtanh.pop %v341
    %v358 = vtanh.pop %v342
    %v359 = vtanh.pop %v343
    %v360 = vtanh.pop %v344
    %v361 = vtanh.pop %v345
    %v362 = vtanh.pop %v346
    %v363 = vtanh.pop %v347
    %v364 = vtanh.pop %v348
    %v365 = vtanh.pop %v349
    %v366 = vtanh.pop %v350
    %v367 = vld [vmem:[#allocation6] sm:$0xff]
    %v368 = vld [vmem:[#allocation6 + $0x8] sm:$0xff]
    %v369 = vld [vmem:[#allocation6 + $0x10] sm:$0xff]
    %v370 = vld [vmem:[#allocation6 + $0x18] sm:$0xff]
    %v371 = vld [vmem:[#allocation6 + $0x20] sm:$0xff]
    %v372 = vld [vmem:[#allocation6 + $0x28] sm:$0xff]
    %v373 = vld [vmem:[#allocation6 + $0x30] sm:$0xff]
    %v374 = vld [vmem:[#allocation6 + $0x38] sm:$0xff]
    %v375 = vld [vmem:[%s6] sm:$0x1]
    %v377 = vperm.slane %v375, 0
    %vm379 = vcmask 523264
    %v381 = vsel %vm379, %v351, 0
    %v384 = vsel %vm379, %v352, 0
    %v387 = vsel %vm379, %v353, 0
    %v390 = vsel %vm379, %v354, 0
    %v393 = vsel %vm379, %v355, 0
    %v396 = vsel %vm379, %v356, 0
    %v399 = vsel %vm379, %v357, 0
    %v402 = vsel %vm379, %v358, 0
    %v405 = vsel %vm379, %v359, 0
    %v408 = vsel %vm379, %v360, 0
    %v411 = vsel %vm379, %v361, 0
    %v414 = vsel %vm379, %v362, 0
    %v417 = vsel %vm379, %v363, 0
    %v420 = vsel %vm379, %v364, 0
    %v423 = vsel %vm379, %v365, 0
    %v426 = vsel %vm379, %v366, 0
    %428 = vmatpush.msra.mxu0 0.0
    %429 = vmatpush.msra.mxu0 0.0
    %430 = vmatpush.msra.mxu0 0.0
    %431 = vmatpush.msra.mxu0 0.0
    %432 = vmatpush.msra.mxu0 0.0
    %433 = vmatpush.msra.mxu0 0.0
    %434 = vmatpush.msra.mxu0 0.0
    %435 = vmatpush.msra.mxu0 0.0
    %436 = vmatpush.msra.mxu0 %v374
    %437 = vmatpush.msra.mxu0 %v373
    %438 = vmatpush.msra.mxu0 %v372
    %439 = vmatpush.msra.mxu0 %v371
    %440 = vmatpush.msra.mxu0 %v370
    %441 = vmatpush.msra.mxu0 %v369
    %442 = vmatpush.msra.mxu0 %v368
    %443 = vmatpush.msra.mxu0 %v367
    %444 = vmatmul.f32.gmra.mxu0 %v381
    %v445 = vpop.f32.mrf.mxu0
    %v446 = vadd.f32 %v377, %v445
    %447 = vmatmul.f32.gmra.mxu0 %v384
    %v448 = vpop.f32.mrf.mxu0
    %v449 = vadd.f32 %v377, %v448
    %450 = vmatmul.f32.gmra.mxu0 %v387
    %v451 = vpop.f32.mrf.mxu0
    %v452 = vadd.f32 %v377, %v451
    %453 = vmatmul.f32.gmra.mxu0 %v390
    %v454 = vpop.f32.mrf.mxu0
    %v455 = vadd.f32 %v377, %v454
    %456 = vmatmul.f32.gmra.mxu0 %v393
    %v457 = vpop.f32.mrf.mxu0
    %v458 = vadd.f32 %v377, %v457
    %459 = vmatmul.f32.gmra.mxu0 %v396
    %v460 = vpop.f32.mrf.mxu0
    %v461 = vadd.f32 %v377, %v460
    %462 = vmatmul.f32.gmra.mxu0 %v399
    %v463 = vpop.f32.mrf.mxu0
    %v464 = vadd.f32 %v377, %v463
    %465 = vmatmul.f32.gmra.mxu0 %v402
    %v466 = vpop.f32.mrf.mxu0
    %v467 = vadd.f32 %v377, %v466
    %468 = vmatmul.f32.gmra.mxu0 %v405
    %v469 = vpop.f32.mrf.mxu0
    %v470 = vadd.f32 %v377, %v469
    %471 = vmatmul.f32.gmra.mxu0 %v408
    %v472 = vpop.f32.mrf.mxu0
    %v473 = vadd.f32 %v377, %v472
    %474 = vmatmul.f32.gmra.mxu0 %v411
    %v475 = vpop.f32.mrf.mxu0
    %v476 = vadd.f32 %v377, %v475
    %477 = vmatmul.f32.gmra.mxu0 %v414
    %v478 = vpop.f32.mrf.mxu0
    %v479 = vadd.f32 %v377, %v478
    %480 = vmatmul.f32.gmra.mxu0 %v417
    %v481 = vpop.f32.mrf.mxu0
    %v482 = vadd.f32 %v377, %v481
    %483 = vmatmul.f32.gmra.mxu0 %v420
    %v484 = vpop.f32.mrf.mxu0
    %v485 = vadd.f32 %v377, %v484
    %486 = vmatmul.f32.gmra.mxu0 %v423
    %v487 = vpop.f32.mrf.mxu0
    %v488 = vadd.f32 %v377, %v487
    %489 = vmatmul.f32.gmra.mxu0 %v426
    %v490 = vpop.f32.mrf.mxu0
    %v491 = vadd.f32 %v377, %v490
    %492 = vdwg.mxu0
    %v493 = vtanh.pop %v446
    %v494 = vtanh.pop %v449
    %v495 = vtanh.pop %v452
    %v496 = vtanh.pop %v455
    %v497 = vtanh.pop %v458
    %v498 = vtanh.pop %v461
    %v499 = vtanh.pop %v464
    %v500 = vtanh.pop %v467
    %v501 = vtanh.pop %v470
    %v502 = vtanh.pop %v473
    %v503 = vtanh.pop %v476
    %v504 = vtanh.pop %v479
    %v505 = vtanh.pop %v482
    %v506 = vtanh.pop %v485
    %v507 = vtanh.pop %v488
    %v508 = vtanh.pop %v491
    %v509 = vld [vmem:[%s7] sm:$0x1]
    %v510 = vld [vmem:[#allocation2] sm:$0x1]
    %512 = vset.pattern.permute.xlu0 0
    %513 = vperm.xlu0 %512, %v510
    %v514 = vpop.permute.xlu0 %513
    %v516 = vperm.slane %v514, 0
    %v518 = vsel %vm379, %v509, 0
    %v521 = vsel %vm379, %v493, 0
    %v524 = vsel %vm379, %v494, 0
    %v527 = vsel %vm379, %v495, 0
    %v530 = vsel %vm379, %v496, 0
    %v533 = vsel %vm379, %v497, 0
    %v536 = vsel %vm379, %v498, 0
    %v539 = vsel %vm379, %v499, 0
    %v542 = vsel %vm379, %v500, 0
    %v545 = vsel %vm379, %v501, 0
    %v548 = vsel %vm379, %v502, 0
    %v551 = vsel %vm379, %v503, 0
    %v554 = vsel %vm379, %v504, 0
    %v557 = vsel %vm379, %v505, 0
    %v560 = vsel %vm379, %v506, 0
    %v563 = vsel %vm379, %v507, 0
    %v566 = vsel %vm379, %v508, 0
    %568 = vmatpush.xpose.msra.mxu0 %v566
    %569 = vmatpush.xpose.msra.mxu0 %v563
    %570 = vmatpush.xpose.msra.mxu0 %v560
    %571 = vmatpush.xpose.msra.mxu0 %v557
    %572 = vmatpush.xpose.msra.mxu0 %v554
    %573 = vmatpush.xpose.msra.mxu0 %v551
    %574 = vmatpush.xpose.msra.mxu0 %v548
    %575 = vmatpush.xpose.msra.mxu0 %v545
    %576 = vmatpush.xpose.msra.mxu0 %v542
    %577 = vmatpush.xpose.msra.mxu0 %v539
    %578 = vmatpush.xpose.msra.mxu0 %v536
    %579 = vmatpush.xpose.msra.mxu0 %v533
    %580 = vmatpush.xpose.msra.mxu0 %v530
    %581 = vmatpush.xpose.msra.mxu0 %v527
    %582 = vmatpush.xpose.msra.mxu0 %v524
    %583 = vmatpush.xpose.msra.mxu0 %v521
    %584 = vmatmul.f32.gmra.mxu0 %v518
    %v585 = vpop.f32.mrf.mxu0
    %v586 = vadd.f32 %v516, %v585
    %587 = vdwg.mxu0
    %v588 = vxor.u32 %v586, 2147483648
    %v589 = vmul.f32 %v588, 1.442695
    %v590 = vpow.pop %v589
    %v591 = vadd.f32 %v590, 1.0
    %v592 = vrcp.pop %v591
    %v593 = vmul.f32 %v591, %v592
    %v594 = vsub.f32 1.0, %v593
    %v595 = vmul.f32 %v592, %v594
    %v596 = vadd.f32 %v592, %v595
    %vm597 = vweird.f32 %v591
    %vm598 = vweird.f32 %v592
    %vm599 = vmor %vm597, %vm598
    %v600 = vsel %vm599, %v592, %v596
    %v601 = vand.u32 2147483647, %v591
    %vm602 = vcmp.eq.f32.partialorder %v601, 8.507059e+37
    %v603 = vand.u32 %v591, 2147483648
    %v604 = vor.u32 1.1754944e-38, %v603
    %v605 = vsel %vm602, %v604, %v600
    %v606 = vmul.f32 1.0, %v605
    %607 = vst [vmem:[#allocation8] sm:$0x1] %v606
    // Predicated region
    $region46: #{tpu_custom_call.1} parent=1 // pred_check
      _
    $region47: #{tpu_custom_call.1} parent=1 // pred_check_branch
      %609 = sbr.rel (0) target = $region49
    $region48: #{tpu_custom_call.1} parent=1 // pred_region
      %611 = vsyncadd [#allocation5], 0
      %s613 = sshll.u32 [#allocation8], 4
      %s614 = int_to_ptr.vmem [resolvable:$true] %s613
      %s615 = sshll.u32 %s9, 4
      %s616 = int_to_ptr.hbm [resolvable:$true] %s615
      %618 = dma.vmem_to_hbm [thread:$0]  %s614, 16, %s616, [#allocation5]
    $region49: #{tpu_custom_call.1} parent=1 // pred_fallthru
      _
    // Predicated region
    $region50: #{tpu_custom_call.1} parent=1 // pred_check
      _
    $region51: #{tpu_custom_call.1} parent=1 // pred_check_branch
      %620 = sbr.rel (0) target = $region53
    $region52: #{tpu_custom_call.1} parent=1 // pred_region
      %622 = dma.done [#allocation5], 16
    $region53: #{tpu_custom_call.1} parent=1 // pred_fallthru
      _
    %623 = vsyncpa [#allocation4], 1
    %624 = vsyncpa [#allocation7], 1
    %625 = vsyncpa [#allocation5], 1

</llo_original>
